<compile_context>
chip_gen: v6e
topology: v6e:2x2x1
jax: 0.10.0
libtpu: 0.0.40
codegen_flags: <defaults>
</compile_context>

<pallas_src>
import jax
import jax.numpy as jnp
from jax import lax
from jax.experimental import pallas as pl
from jax.experimental.pallas import tpu as pltpu

EPS = 1e-5
K = 5      # conv kernel size
PAD = 2    # conv padding ("same" for stride 1)


def _basic_block_kernel(x_ref, w1_ref, g1_ref, be1_ref,
                        w2_ref, g2_ref, be2_ref,
                        o_ref, slab_ref):
    N, C, L = x_ref.shape
    KCP, NL = slab_ref.shape
    CP = KCP // K                      # channels rounded up to the sublane tile (8)
    inv_nl = 1.0 / float(NL)

    # Zero the im2col slab exactly once: per-tap halo lanes (conv zero padding
    # at batch-segment boundaries) and the CP-C alignment rows are never
    # written again, so they stay zero for both convs.
    slab_ref[...] = jnp.zeros_like(slab_ref)

    def fill_slab_from_ref():
        # slab[k*CP + c, n*L + l] = x[n, c, l + k - PAD], zero outside.
        for k in range(K):
            s = PAD - k                              # piece[l] = inp[l - s]
            lo, hi = max(0, s), L + min(0, s)
            for n in range(N):
                slab_ref[k * CP:k * CP + C, n * L + lo:n * L + hi] = \
                    x_ref[n, :, lo - s:hi - s]

    def fill_slab_from_val(h):                       # h: (C, N*L)
        for k in range(K):
            s = PAD - k
            lo, hi = max(0, s), L + min(0, s)
            for n in range(N):
                slab_ref[k * CP:k * CP + C, n * L + lo:n * L + hi] = \
                    h[:, n * L + lo - s:n * L + hi - s]

    def conv_matmul(w_ref):
        # One MXU dot per conv: (C, K*CP) @ (K*CP, N*L) -> (C, N*L).
        # The conv bias is omitted on purpose: training-mode BN subtracts the
        # per-channel batch mean, which cancels a per-channel bias exactly.
        return jnp.dot(w_ref[...], slab_ref[...],
                       preferred_element_type=jnp.float32)

    def batchnorm(h, gamma, beta):
        # Biased batch stats over the (N, L) lane axis; two-pass (centered)
        # variance, then fold the affine into a single scale/shift.
        mean = jnp.sum(h, axis=1, keepdims=True) * inv_nl        # (C, 1)
        d = h - mean
        var = jnp.sum(d * d, axis=1, keepdims=True) * inv_nl
        scale = gamma * lax.rsqrt(var + EPS)
        shift = beta - mean * scale
        return h * scale + shift

    # conv1 -> bn1 -> relu
    fill_slab_from_ref()
    h = jnp.maximum(batchnorm(conv_matmul(w1_ref), g1_ref[...], be1_ref[...]),
                    0.0)
    # TODO(synk): dropout with p > 0 would use pltpu.prng_seed/prng_random_bits;
    # the module default p=0.0 is an identity.

    # conv2 -> bn2
    fill_slab_from_val(h)
    h = batchnorm(conv_matmul(w2_ref), g2_ref[...], be2_ref[...])

    # residual add + relu, written back per batch segment in NCL layout
    for n in range(N):
        o_ref[n, :, :] = jnp.maximum(h[:, n * L:(n + 1) * L] + x_ref[n],
                                     0.0).astype(o_ref.dtype)


def basic_block(x_ncl, params):
    """x_ncl: (N, C, L) float32 (PyTorch Conv1d NCL layout). Returns (N, C, L)."""
    w1, b1, g1, be1, w2, b2, g2, be2 = params
    del b1, b2  # conv biases cancel exactly under training-mode BatchNorm
    N, C, L = x_ncl.shape
    CP = ((C + 7) // 8) * 8            # channel rows per tap, sublane aligned

    def flat_w(w):
        # (C_out, C_in, K) -> (C_out, K*CP): tap-major, channel-minor, zero
        # padded to the sublane tile so the in-kernel slab blocks stay aligned.
        wt = jnp.transpose(w, (0, 2, 1)).astype(jnp.float32)     # (C_out, K, C_in)
        wt = jnp.pad(wt, ((0, 0), (0, 0), (0, CP - C)))
        return wt.reshape(C, K * CP)

    def per_ch(v):
        return v.reshape(C, 1).astype(jnp.float32)

    vmem = pl.BlockSpec(memory_space=pltpu.MemorySpace.VMEM)
    return pl.pallas_call(
        _basic_block_kernel,
        out_shape=jax.ShapeDtypeStruct((N, C, L), jnp.float32),
        in_specs=[vmem] * 7,
        out_specs=vmem,
        scratch_shapes=[pltpu.VMEM((K * CP, N * L), jnp.float32)],  # im2col slab
        compiler_params=pltpu.CompilerParams(vmem_limit_bytes=32 * 1024 * 1024),
    )(x_ncl.astype(jnp.float32),
      flat_w(w1), per_ch(g1), per_ch(be1),
      flat_w(w2), per_ch(g2), per_ch(be2))


def _reference(x, params):
    """Pure-JAX reference of the PyTorch forward (NCL layout), biases included."""
    w1, b1, g1, be1, w2, b2, g2, be2 = params

    def conv(x, w, b):
        y = lax.conv_general_dilated(
            x, w, window_strides=(1,), padding=[(PAD, PAD)],
            dimension_numbers=("NCH", "OIH", "NCH"))
        return y + b[None, :, None]

    def bn(x, g, be):
        m = jnp.mean(x, axis=(0, 2), keepdims=True)
        v = jnp.mean(jnp.square(x - m), axis=(0, 2), keepdims=True)
        return (x - m) * lax.rsqrt(v + EPS) * g[None, :, None] + be[None, :, None]

    h = jnp.maximum(bn(conv(x, w1, b1), g1, be1), 0.0)
    h = bn(conv(h, w2, b2), g2, be2) + x
    return jnp.maximum(h, 0.0)


if __name__ == "__main__":
    N, C, L = 2, 4, 16  # batch, channels, sequence length

    key = jax.random.PRNGKey(0)
    k = jax.random.split(key, 5)
    x = jax.random.normal(k[0], (N, C, L), jnp.float32)
    # Conv1d weights in PyTorch layout (C_out, C_in, K); deterministic init.
    w1 = 0.1 * jax.random.normal(k[1], (C, C, K), jnp.float32)
    b1 = 0.1 * jax.random.normal(k[2], (C,), jnp.float32)
    w2 = 0.1 * jax.random.normal(k[3], (C, C, K), jnp.float32)
    b2 = 0.1 * jax.random.normal(k[4], (C,), jnp.float32)
    # BatchNorm1d default affine init: gamma=1, beta=0.
    g1 = jnp.ones((C,), jnp.float32)
    be1 = jnp.zeros((C,), jnp.float32)
    g2 = jnp.ones((C,), jnp.float32)
    be2 = jnp.zeros((C,), jnp.float32)

    params = (w1, b1, g1, be1, w2, b2, g2, be2)

    out = jax.block_until_ready(basic_block(x, params))
    assert out.shape == (N, C, L), out.shape

    ref = jax.block_until_ready(_reference(x, params))
    max_err = float(jnp.max(jnp.abs(out - ref)))
    # f32 default-precision matmul/conv on TPU (bf16 MXU passes) bounds how
    # tightly the in-kernel matmul and the XLA conv reference can agree.
    assert max_err < 1e-2, f"max abs error vs reference: {max_err}"

    print("KERNEL_OK")
</pallas_src>

<mosaic_0001>
module attributes {stable_mosaic.version = 11 : i64} {
  func.func @_basic_block_kernel(%arg0: memref<2x4x16xf32, #tpu.memory_space<vmem>>, %arg1: memref<4x40xf32, #tpu.memory_space<vmem>>, %arg2: memref<4x1xf32, #tpu.memory_space<vmem>>, %arg3: memref<4x1xf32, #tpu.memory_space<vmem>>, %arg4: memref<4x40xf32, #tpu.memory_space<vmem>>, %arg5: memref<4x1xf32, #tpu.memory_space<vmem>>, %arg6: memref<4x1xf32, #tpu.memory_space<vmem>>, %arg7: memref<2x4x16xf32, #tpu.memory_space<vmem>>, %arg8: memref<40x32xf32, #tpu.memory_space<vmem>>) attributes {dimension_semantics = [], scalar_prefetch = 0 : i64, scratch_operands = 1 : i64, tpu.core_type = #tpu.core_type<tc>} {
    %cst = arith.constant 0.000000e+00 : f32
    %0 = vector.broadcast %cst : f32 to vector<40x32xf32>
    %c0 = arith.constant 0 : index
    %c0_0 = arith.constant 0 : index
    %1 = vector.load %arg8[%c0, %c0_0] : memref<40x32xf32, #tpu.memory_space<vmem>>, vector<40x32xf32>
    tpu.vector_store %arg8[%c0, %c0_0], %0 {strides = array<i32>} : memref<40x32xf32, #tpu.memory_space<vmem>>, vector<40x32xf32>,
    %c0_1 = arith.constant 0 : index
    %c0_2 = arith.constant 0 : index
    %c0_3 = arith.constant 0 : index
    %2 = vector.load %arg0[%c0_1, %c0_2, %c0_3] : memref<2x4x16xf32, #tpu.memory_space<vmem>>, vector<1x4x14xf32>
    %3 = vector.shape_cast %2 : vector<1x4x14xf32> to vector<4x14xf32>
    %c0_4 = arith.constant 0 : index
    %c2 = arith.constant 2 : index
    %4 = vector.load %arg8[%c0_4, %c2] : memref<40x32xf32, #tpu.memory_space<vmem>>, vector<4x14xf32>
    tpu.vector_store %arg8[%c0_4, %c2], %3 {strides = array<i32>} : memref<40x32xf32, #tpu.memory_space<vmem>>, vector<4x14xf32>,
    %c1 = arith.constant 1 : index
    %c0_5 = arith.constant 0 : index
    %c0_6 = arith.constant 0 : index
    %5 = vector.load %arg0[%c1, %c0_5, %c0_6] : memref<2x4x16xf32, #tpu.memory_space<vmem>>, vector<1x4x14xf32>
    %6 = vector.shape_cast %5 : vector<1x4x14xf32> to vector<4x14xf32>
    %c0_7 = arith.constant 0 : index
    %c18 = arith.constant 18 : index
    %7 = vector.load %arg8[%c0_7, %c18] : memref<40x32xf32, #tpu.memory_space<vmem>>, vector<4x14xf32>
    tpu.vector_store %arg8[%c0_7, %c18], %6 {strides = array<i32>} : memref<40x32xf32, #tpu.memory_space<vmem>>, vector<4x14xf32>,
    %c0_8 = arith.constant 0 : index
    %c0_9 = arith.constant 0 : index
    %c0_10 = arith.constant 0 : index
    %8 = vector.load %arg0[%c0_8, %c0_9, %c0_10] : memref<2x4x16xf32, #tpu.memory_space<vmem>>, vector<1x4x15xf32>
    %9 = vector.shape_cast %8 : vector<1x4x15xf32> to vector<4x15xf32>
    %c8 = arith.constant 8 : index
    %c1_11 = arith.constant 1 : index
    %10 = vector.load %arg8[%c8, %c1_11] : memref<40x32xf32, #tpu.memory_space<vmem>>, vector<4x15xf32>
    tpu.vector_store %arg8[%c8, %c1_11], %9 {strides = array<i32>} : memref<40x32xf32, #tpu.memory_space<vmem>>, vector<4x15xf32>,
    %c1_12 = arith.constant 1 : index
    %c0_13 = arith.constant 0 : index
    %c0_14 = arith.constant 0 : index
    %11 = vector.load %arg0[%c1_12, %c0_13, %c0_14] : memref<2x4x16xf32, #tpu.memory_space<vmem>>, vector<1x4x15xf32>
    %12 = vector.shape_cast %11 : vector<1x4x15xf32> to vector<4x15xf32>
    %c8_15 = arith.constant 8 : index
    %c17 = arith.constant 17 : index
    %13 = vector.load %arg8[%c8_15, %c17] : memref<40x32xf32, #tpu.memory_space<vmem>>, vector<4x15xf32>
    tpu.vector_store %arg8[%c8_15, %c17], %12 {strides = array<i32>} : memref<40x32xf32, #tpu.memory_space<vmem>>, vector<4x15xf32>,
    %c0_16 = arith.constant 0 : index
    %c0_17 = arith.constant 0 : index
    %c0_18 = arith.constant 0 : index
    %14 = vector.load %arg0[%c0_16, %c0_17, %c0_18] : memref<2x4x16xf32, #tpu.memory_space<vmem>>, vector<1x4x16xf32>
    %15 = vector.shape_cast %14 : vector<1x4x16xf32> to vector<4x16xf32>
    %c16 = arith.constant 16 : index
    %c0_19 = arith.constant 0 : index
    %16 = vector.load %arg8[%c16, %c0_19] : memref<40x32xf32, #tpu.memory_space<vmem>>, vector<4x16xf32>
    tpu.vector_store %arg8[%c16, %c0_19], %15 {strides = array<i32>} : memref<40x32xf32, #tpu.memory_space<vmem>>, vector<4x16xf32>,
    %c1_20 = arith.constant 1 : index
    %c0_21 = arith.constant 0 : index
    %c0_22 = arith.constant 0 : index
    %17 = vector.load %arg0[%c1_20, %c0_21, %c0_22] : memref<2x4x16xf32, #tpu.memory_space<vmem>>, vector<1x4x16xf32>
    %18 = vector.shape_cast %17 : vector<1x4x16xf32> to vector<4x16xf32>
    %c16_23 = arith.constant 16 : index
    %c16_24 = arith.constant 16 : index
    %19 = vector.load %arg8[%c16_23, %c16_24] : memref<40x32xf32, #tpu.memory_space<vmem>>, vector<4x16xf32>
    tpu.vector_store %arg8[%c16_23, %c16_24], %18 {strides = array<i32>} : memref<40x32xf32, #tpu.memory_space<vmem>>, vector<4x16xf32>,
    %c0_25 = arith.constant 0 : index
    %c0_26 = arith.constant 0 : index
    %c1_27 = arith.constant 1 : index
    %20 = vector.load %arg0[%c0_25, %c0_26, %c1_27] : memref<2x4x16xf32, #tpu.memory_space<vmem>>, vector<1x4x15xf32>
    %21 = vector.shape_cast %20 : vector<1x4x15xf32> to vector<4x15xf32>
    %c24 = arith.constant 24 : index
    %c0_28 = arith.constant 0 : index
    %22 = vector.load %arg8[%c24, %c0_28] : memref<40x32xf32, #tpu.memory_space<vmem>>, vector<4x15xf32>
    tpu.vector_store %arg8[%c24, %c0_28], %21 {strides = array<i32>} : memref<40x32xf32, #tpu.memory_space<vmem>>, vector<4x15xf32>,
    %c1_29 = arith.constant 1 : index
    %c0_30 = arith.constant 0 : index
    %c1_31 = arith.constant 1 : index
    %23 = vector.load %arg0[%c1_29, %c0_30, %c1_31] : memref<2x4x16xf32, #tpu.memory_space<vmem>>, vector<1x4x15xf32>
    %24 = vector.shape_cast %23 : vector<1x4x15xf32> to vector<4x15xf32>
    %c24_32 = arith.constant 24 : index
    %c16_33 = arith.constant 16 : index
    %25 = vector.load %arg8[%c24_32, %c16_33] : memref<40x32xf32, #tpu.memory_space<vmem>>, vector<4x15xf32>
    tpu.vector_store %arg8[%c24_32, %c16_33], %24 {strides = array<i32>} : memref<40x32xf32, #tpu.memory_space<vmem>>, vector<4x15xf32>,
    %c0_34 = arith.constant 0 : index
    %c0_35 = arith.constant 0 : index
    %c2_36 = arith.constant 2 : index
    %26 = vector.load %arg0[%c0_34, %c0_35, %c2_36] : memref<2x4x16xf32, #tpu.memory_space<vmem>>, vector<1x4x14xf32>
    %27 = vector.shape_cast %26 : vector<1x4x14xf32> to vector<4x14xf32>
    %c32 = arith.constant 32 : index
    %c0_37 = arith.constant 0 : index
    %28 = vector.load %arg8[%c32, %c0_37] : memref<40x32xf32, #tpu.memory_space<vmem>>, vector<4x14xf32>
    tpu.vector_store %arg8[%c32, %c0_37], %27 {strides = array<i32>} : memref<40x32xf32, #tpu.memory_space<vmem>>, vector<4x14xf32>,
    %c1_38 = arith.constant 1 : index
    %c0_39 = arith.constant 0 : index
    %c2_40 = arith.constant 2 : index
    %29 = vector.load %arg0[%c1_38, %c0_39, %c2_40] : memref<2x4x16xf32, #tpu.memory_space<vmem>>, vector<1x4x14xf32>
    %30 = vector.shape_cast %29 : vector<1x4x14xf32> to vector<4x14xf32>
    %c32_41 = arith.constant 32 : index
    %c16_42 = arith.constant 16 : index
    %31 = vector.load %arg8[%c32_41, %c16_42] : memref<40x32xf32, #tpu.memory_space<vmem>>, vector<4x14xf32>
    tpu.vector_store %arg8[%c32_41, %c16_42], %30 {strides = array<i32>} : memref<40x32xf32, #tpu.memory_space<vmem>>, vector<4x14xf32>,
    %c0_43 = arith.constant 0 : index
    %c0_44 = arith.constant 0 : index
    %32 = vector.load %arg1[%c0_43, %c0_44] : memref<4x40xf32, #tpu.memory_space<vmem>>, vector<4x40xf32>
    %c0_45 = arith.constant 0 : index
    %c0_46 = arith.constant 0 : index
    %33 = vector.load %arg8[%c0_45, %c0_46] : memref<40x32xf32, #tpu.memory_space<vmem>>, vector<40x32xf32>
    %cst_47 = arith.constant dense<0.000000e+00> : vector<4x32xf32>
    %34 = tpu.matmul %32, %33, %cst_47 {dimension_numbers = #tpu.dot_dimension_numbers<[1], [0], [0], [1], [0, 0, 1, 1], [], []>} : vector<4x40xf32>, vector<40x32xf32>, vector<4x32xf32> -> vector<4x32xf32>
    %c0_48 = arith.constant 0 : index
    %c0_49 = arith.constant 0 : index
    %35 = vector.load %arg2[%c0_48, %c0_49] : memref<4x1xf32, #tpu.memory_space<vmem>>, vector<4x1xf32>
    %c0_50 = arith.constant 0 : index
    %c0_51 = arith.constant 0 : index
    %36 = vector.load %arg3[%c0_50, %c0_51] : memref<4x1xf32, #tpu.memory_space<vmem>>, vector<4x1xf32>
    %cst_52 = arith.constant dense<0.000000e+00> : vector<4xf32>
    %37 = vector.multi_reduction <add>, %34, %cst_52 [1] : vector<4x32xf32> to vector<4xf32>
    %38 = vector.shape_cast %37 : vector<4xf32> to vector<4x1xf32>
    %cst_53 = arith.constant 3.125000e-02 : f32
    %39 = vector.broadcast %cst_53 : f32 to vector<4x1xf32>
    %40 = arith.mulf %38, %39 : vector<4x1xf32>
    %41 = vector.broadcast %40 : vector<4x1xf32> to vector<4x32xf32>
    %42 = arith.subf %34, %41 : vector<4x32xf32>
    %43 = arith.mulf %42, %42 : vector<4x32xf32>
    %cst_54 = arith.constant dense<0.000000e+00> : vector<4xf32>
    %44 = vector.multi_reduction <add>, %43, %cst_54 [1] : vector<4x32xf32> to vector<4xf32>
    %45 = vector.shape_cast %44 : vector<4xf32> to vector<4x1xf32>
    %cst_55 = arith.constant 3.125000e-02 : f32
    %46 = vector.broadcast %cst_55 : f32 to vector<4x1xf32>
    %47 = arith.mulf %45, %46 : vector<4x1xf32>
    %cst_56 = arith.constant 9.99999974E-6 : f32
    %48 = vector.broadcast %cst_56 : f32 to vector<4x1xf32>
    %49 = arith.addf %47, %48 : vector<4x1xf32>
    %50 = math.rsqrt %49 : vector<4x1xf32>
    %51 = arith.mulf %35, %50 : vector<4x1xf32>
    %52 = arith.mulf %40, %51 : vector<4x1xf32>
    %53 = arith.subf %36, %52 : vector<4x1xf32>
    %54 = vector.broadcast %51 : vector<4x1xf32> to vector<4x32xf32>
    %55 = arith.mulf %34, %54 : vector<4x32xf32>
    %56 = vector.broadcast %53 : vector<4x1xf32> to vector<4x32xf32>
    %57 = arith.addf %55, %56 : vector<4x32xf32>
    %cst_57 = arith.constant 0.000000e+00 : f32
    %58 = vector.broadcast %cst_57 : f32 to vector<4x32xf32>
    %59 = arith.maximumf %57, %58 : vector<4x32xf32>
    %60 = vector.extract_strided_slice %59 {offsets = [0, 0], sizes = [4, 14], strides = [1, 1]} : vector<4x32xf32> to vector<4x14xf32>
    %c0_58 = arith.constant 0 : index
    %c2_59 = arith.constant 2 : index
    %61 = vector.load %arg8[%c0_58, %c2_59] : memref<40x32xf32, #tpu.memory_space<vmem>>, vector<4x14xf32>
    tpu.vector_store %arg8[%c0_58, %c2_59], %60 {strides = array<i32>} : memref<40x32xf32, #tpu.memory_space<vmem>>, vector<4x14xf32>,
    %62 = vector.extract_strided_slice %59 {offsets = [0, 16], sizes = [4, 14], strides = [1, 1]} : vector<4x32xf32> to vector<4x14xf32>
    %c0_60 = arith.constant 0 : index
    %c18_61 = arith.constant 18 : index
    %63 = vector.load %arg8[%c0_60, %c18_61] : memref<40x32xf32, #tpu.memory_space<vmem>>, vector<4x14xf32>
    tpu.vector_store %arg8[%c0_60, %c18_61], %62 {strides = array<i32>} : memref<40x32xf32, #tpu.memory_space<vmem>>, vector<4x14xf32>,
    %64 = vector.extract_strided_slice %59 {offsets = [0, 0], sizes = [4, 15], strides = [1, 1]} : vector<4x32xf32> to vector<4x15xf32>
    %c8_62 = arith.constant 8 : index
    %c1_63 = arith.constant 1 : index
    %65 = vector.load %arg8[%c8_62, %c1_63] : memref<40x32xf32, #tpu.memory_space<vmem>>, vector<4x15xf32>
    tpu.vector_store %arg8[%c8_62, %c1_63], %64 {strides = array<i32>} : memref<40x32xf32, #tpu.memory_space<vmem>>, vector<4x15xf32>,
    %66 = vector.extract_strided_slice %59 {offsets = [0, 16], sizes = [4, 15], strides = [1, 1]} : vector<4x32xf32> to vector<4x15xf32>
    %c8_64 = arith.constant 8 : index
    %c17_65 = arith.constant 17 : index
    %67 = vector.load %arg8[%c8_64, %c17_65] : memref<40x32xf32, #tpu.memory_space<vmem>>, vector<4x15xf32>
    tpu.vector_store %arg8[%c8_64, %c17_65], %66 {strides = array<i32>} : memref<40x32xf32, #tpu.memory_space<vmem>>, vector<4x15xf32>,
    %68 = vector.extract_strided_slice %59 {offsets = [0, 0], sizes = [4, 16], strides = [1, 1]} : vector<4x32xf32> to vector<4x16xf32>
    %c16_66 = arith.constant 16 : index
    %c0_67 = arith.constant 0 : index
    %69 = vector.load %arg8[%c16_66, %c0_67] : memref<40x32xf32, #tpu.memory_space<vmem>>, vector<4x16xf32>
    tpu.vector_store %arg8[%c16_66, %c0_67], %68 {strides = array<i32>} : memref<40x32xf32, #tpu.memory_space<vmem>>, vector<4x16xf32>,
    %70 = vector.extract_strided_slice %59 {offsets = [0, 16], sizes = [4, 16], strides = [1, 1]} : vector<4x32xf32> to vector<4x16xf32>
    %c16_68 = arith.constant 16 : index
    %c16_69 = arith.constant 16 : index
    %71 = vector.load %arg8[%c16_68, %c16_69] : memref<40x32xf32, #tpu.memory_space<vmem>>, vector<4x16xf32>
    tpu.vector_store %arg8[%c16_68, %c16_69], %70 {strides = array<i32>} : memref<40x32xf32, #tpu.memory_space<vmem>>, vector<4x16xf32>,
    %72 = vector.extract_strided_slice %59 {offsets = [0, 1], sizes = [4, 15], strides = [1, 1]} : vector<4x32xf32> to vector<4x15xf32>
    %c24_70 = arith.constant 24 : index
    %c0_71 = arith.constant 0 : index
    %73 = vector.load %arg8[%c24_70, %c0_71] : memref<40x32xf32, #tpu.memory_space<vmem>>, vector<4x15xf32>
    tpu.vector_store %arg8[%c24_70, %c0_71], %72 {strides = array<i32>} : memref<40x32xf32, #tpu.memory_space<vmem>>, vector<4x15xf32>,
    %74 = vector.extract_strided_slice %59 {offsets = [0, 17], sizes = [4, 15], strides = [1, 1]} : vector<4x32xf32> to vector<4x15xf32>
    %c24_72 = arith.constant 24 : index
    %c16_73 = arith.constant 16 : index
    %75 = vector.load %arg8[%c24_72, %c16_73] : memref<40x32xf32, #tpu.memory_space<vmem>>, vector<4x15xf32>
    tpu.vector_store %arg8[%c24_72, %c16_73], %74 {strides = array<i32>} : memref<40x32xf32, #tpu.memory_space<vmem>>, vector<4x15xf32>,
    %76 = vector.extract_strided_slice %59 {offsets = [0, 2], sizes = [4, 14], strides = [1, 1]} : vector<4x32xf32> to vector<4x14xf32>
    %c32_74 = arith.constant 32 : index
    %c0_75 = arith.constant 0 : index
    %77 = vector.load %arg8[%c32_74, %c0_75] : memref<40x32xf32, #tpu.memory_space<vmem>>, vector<4x14xf32>
    tpu.vector_store %arg8[%c32_74, %c0_75], %76 {strides = array<i32>} : memref<40x32xf32, #tpu.memory_space<vmem>>, vector<4x14xf32>,
    %78 = vector.extract_strided_slice %59 {offsets = [0, 18], sizes = [4, 14], strides = [1, 1]} : vector<4x32xf32> to vector<4x14xf32>
    %c32_76 = arith.constant 32 : index
    %c16_77 = arith.constant 16 : index
    %79 = vector.load %arg8[%c32_76, %c16_77] : memref<40x32xf32, #tpu.memory_space<vmem>>, vector<4x14xf32>
    tpu.vector_store %arg8[%c32_76, %c16_77], %78 {strides = array<i32>} : memref<40x32xf32, #tpu.memory_space<vmem>>, vector<4x14xf32>,
    %c0_78 = arith.constant 0 : index
    %c0_79 = arith.constant 0 : index
    %80 = vector.load %arg4[%c0_78, %c0_79] : memref<4x40xf32, #tpu.memory_space<vmem>>, vector<4x40xf32>
    %c0_80 = arith.constant 0 : index
    %c0_81 = arith.constant 0 : index
    %81 = vector.load %arg8[%c0_80, %c0_81] : memref<40x32xf32, #tpu.memory_space<vmem>>, vector<40x32xf32>
    %cst_82 = arith.constant dense<0.000000e+00> : vector<4x32xf32>
    %82 = tpu.matmul %80, %81, %cst_82 {dimension_numbers = #tpu.dot_dimension_numbers<[1], [0], [0], [1], [0, 0, 1, 1], [], []>} : vector<4x40xf32>, vector<40x32xf32>, vector<4x32xf32> -> vector<4x32xf32>
    %c0_83 = arith.constant 0 : index
    %c0_84 = arith.constant 0 : index
    %83 = vector.load %arg5[%c0_83, %c0_84] : memref<4x1xf32, #tpu.memory_space<vmem>>, vector<4x1xf32>
    %c0_85 = arith.constant 0 : index
    %c0_86 = arith.constant 0 : index
    %84 = vector.load %arg6[%c0_85, %c0_86] : memref<4x1xf32, #tpu.memory_space<vmem>>, vector<4x1xf32>
    %cst_87 = arith.constant dense<0.000000e+00> : vector<4xf32>
    %85 = vector.multi_reduction <add>, %82, %cst_87 [1] : vector<4x32xf32> to vector<4xf32>
    %86 = vector.shape_cast %85 : vector<4xf32> to vector<4x1xf32>
    %cst_88 = arith.constant 3.125000e-02 : f32
    %87 = vector.broadcast %cst_88 : f32 to vector<4x1xf32>
    %88 = arith.mulf %86, %87 : vector<4x1xf32>
    %89 = vector.broadcast %88 : vector<4x1xf32> to vector<4x32xf32>
    %90 = arith.subf %82, %89 : vector<4x32xf32>
    %91 = arith.mulf %90, %90 : vector<4x32xf32>
    %cst_89 = arith.constant dense<0.000000e+00> : vector<4xf32>
    %92 = vector.multi_reduction <add>, %91, %cst_89 [1] : vector<4x32xf32> to vector<4xf32>
    %93 = vector.shape_cast %92 : vector<4xf32> to vector<4x1xf32>
    %cst_90 = arith.constant 3.125000e-02 : f32
    %94 = vector.broadcast %cst_90 : f32 to vector<4x1xf32>
    %95 = arith.mulf %93, %94 : vector<4x1xf32>
    %cst_91 = arith.constant 9.99999974E-6 : f32
    %96 = vector.broadcast %cst_91 : f32 to vector<4x1xf32>
    %97 = arith.addf %95, %96 : vector<4x1xf32>
    %98 = math.rsqrt %97 : vector<4x1xf32>
    %99 = arith.mulf %83, %98 : vector<4x1xf32>
    %100 = arith.mulf %88, %99 : vector<4x1xf32>
    %101 = arith.subf %84, %100 : vector<4x1xf32>
    %102 = vector.broadcast %99 : vector<4x1xf32> to vector<4x32xf32>
    %103 = arith.mulf %82, %102 : vector<4x32xf32>
    %104 = vector.broadcast %101 : vector<4x1xf32> to vector<4x32xf32>
    %105 = arith.addf %103, %104 : vector<4x32xf32>
    %106 = vector.extract_strided_slice %105 {offsets = [0, 0], sizes = [4, 16], strides = [1, 1]} : vector<4x32xf32> to vector<4x16xf32>
    %c0_92 = arith.constant 0 : index
    %c0_93 = arith.constant 0 : index
    %c0_94 = arith.constant 0 : index
    %107 = vector.load %arg0[%c0_92, %c0_93, %c0_94] : memref<2x4x16xf32, #tpu.memory_space<vmem>>, vector<1x4x16xf32>
    %108 = vector.shape_cast %107 : vector<1x4x16xf32> to vector<4x16xf32>
    %109 = arith.addf %106, %108 : vector<4x16xf32>
    %cst_95 = arith.constant 0.000000e+00 : f32
    %110 = vector.broadcast %cst_95 : f32 to vector<4x16xf32>
    %111 = arith.maximumf %109, %110 : vector<4x16xf32>
    %c0_96 = arith.constant 0 : index
    %c0_97 = arith.constant 0 : index
    %c0_98 = arith.constant 0 : index
    %112 = vector.load %arg7[%c0_96, %c0_97, %c0_98] : memref<2x4x16xf32, #tpu.memory_space<vmem>>, vector<1x4x16xf32>
    %113 = vector.shape_cast %112 : vector<1x4x16xf32> to vector<4x16xf32>
    %114 = vector.shape_cast %111 : vector<4x16xf32> to vector<1x4x16xf32>
    tpu.vector_store %arg7[%c0_96, %c0_97, %c0_98], %114 {strides = array<i32>} : memref<2x4x16xf32, #tpu.memory_space<vmem>>, vector<1x4x16xf32>,
    %115 = vector.extract_strided_slice %105 {offsets = [0, 16], sizes = [4, 16], strides = [1, 1]} : vector<4x32xf32> to vector<4x16xf32>
    %c1_99 = arith.constant 1 : index
    %c0_100 = arith.constant 0 : index
    %c0_101 = arith.constant 0 : index
    %116 = vector.load %arg0[%c1_99, %c0_100, %c0_101] : memref<2x4x16xf32, #tpu.memory_space<vmem>>, vector<1x4x16xf32>
    %117 = vector.shape_cast %116 : vector<1x4x16xf32> to vector<4x16xf32>
    %118 = arith.addf %115, %117 : vector<4x16xf32>
    %cst_102 = arith.constant 0.000000e+00 : f32
    %119 = vector.broadcast %cst_102 : f32 to vector<4x16xf32>
    %120 = arith.maximumf %118, %119 : vector<4x16xf32>
    %c1_103 = arith.constant 1 : index
    %c0_104 = arith.constant 0 : index
    %c0_105 = arith.constant 0 : index
    %121 = vector.load %arg7[%c1_103, %c0_104, %c0_105] : memref<2x4x16xf32, #tpu.memory_space<vmem>>, vector<1x4x16xf32>
    %122 = vector.shape_cast %121 : vector<1x4x16xf32> to vector<4x16xf32>
    %123 = vector.shape_cast %120 : vector<4x16xf32> to vector<1x4x16xf32>
    tpu.vector_store %arg7[%c1_103, %c0_104, %c0_105], %123 {strides = array<i32>} : memref<2x4x16xf32, #tpu.memory_space<vmem>>, vector<1x4x16xf32>,
    return
  }
}

</mosaic_0001>

<llo_original>
// kernel: tpu_custom_call.1
$region0: #{tpu_custom_call.1}
  #allocation0 [shape = 'u32[]', space=smem, size = 0x4, offset = 0x4, fixed_abs, tag = 'smem constant byte address 0x4 - core index']
  #allocation1 [shape = 'u32[144,128]{1,0:T(1,128)}', space=vmem, size = 0x12000, scoped, tag = 'internal scratch']
  #allocation2 [shape = 'f32[40,32]{1,0:T(8,128)}', space=vmem, size = 0x5000, scoped, tag = 'scratch operand']
  %s0 = inlined_call_operand.vmem [shape: f32[2,4,16], index: 0, kind: input, shape index: {}]
  %s1 = inlined_call_operand.vmem [shape: f32[4,40], index: 1, kind: input, shape index: {}]
  %s2 = inlined_call_operand.vmem [shape: f32[4,1], index: 2, kind: input, shape index: {}]
  %s3 = inlined_call_operand.vmem [shape: f32[4,1], index: 3, kind: input, shape index: {}]
  %s4 = inlined_call_operand.vmem [shape: f32[4,40], index: 4, kind: input, shape index: {}]
  %s5 = inlined_call_operand.vmem [shape: f32[4,1], index: 5, kind: input, shape index: {}]
  %s6 = inlined_call_operand.vmem [shape: f32[4,1], index: 6, kind: input, shape index: {}]
  %s7 = inlined_call_operand.hbm [shape: f32[2,4,16], index: 7, kind: output, shape index: {}]
  %s8 = sld [smem:[#allocation0]]
  $region38: #{tpu_custom_call.1} parent=0
    _
  %s10 = ssub.s32 1, %s8
  %s11 = scalar_select 0, %s10, %s8
  $region1: #{tpu_custom_call.1} parent=0
    #allocation3 [shape = 'u8[4096]{0}', space=vmem, size = 0x1000, scoped, tag = 'output window, operand 0, single buffered']
    #allocation4 [shape = 's32[1]{0}', space=sflag, size = 0x4, scoped, tag = 'scoped memory for tpu_custom_call.1']
    %12 = vsyncpa [#allocation4], 0
    // Predicated region
    $region2: #{tpu_custom_call.1} parent=1 // pred_check
      _
    $region3: #{tpu_custom_call.1} parent=1 // pred_check_branch
      %14 = sbr.rel (0) target = $region5
    $region4: #{tpu_custom_call.1} parent=1 // pred_region
      _
    $region5: #{tpu_custom_call.1} parent=1 // pred_fallthru
      _
    // Predicated region
    $region6: #{tpu_custom_call.1} parent=1 // pred_check
      _
    $region7: #{tpu_custom_call.1} parent=1 // pred_check_branch
      %16 = sbr.rel (0) target = $region9
    $region8: #{tpu_custom_call.1} parent=1 // pred_region
      _
    $region9: #{tpu_custom_call.1} parent=1 // pred_fallthru
      _
    // Predicated region
    $region10: #{tpu_custom_call.1} parent=1 // pred_check
      _
    $region11: #{tpu_custom_call.1} parent=1 // pred_check_branch
      %18 = sbr.rel (0) target = $region13
    $region12: #{tpu_custom_call.1} parent=1 // pred_region
      _
    $region13: #{tpu_custom_call.1} parent=1 // pred_fallthru
      _
    // Predicated region
    $region14: #{tpu_custom_call.1} parent=1 // pred_check
      _
    $region15: #{tpu_custom_call.1} parent=1 // pred_check_branch
      %20 = sbr.rel (0) target = $region17
    $region16: #{tpu_custom_call.1} parent=1 // pred_region
      _
    $region17: #{tpu_custom_call.1} parent=1 // pred_fallthru
      _
    // Predicated region
    $region18: #{tpu_custom_call.1} parent=1 // pred_check
      _
    $region19: #{tpu_custom_call.1} parent=1 // pred_check_branch
      %22 = sbr.rel (0) target = $region21
    $region20: #{tpu_custom_call.1} parent=1 // pred_region
      _
    $region21: #{tpu_custom_call.1} parent=1 // pred_fallthru
      _
    // Predicated region
    $region22: #{tpu_custom_call.1} parent=1 // pred_check
      _
    $region23: #{tpu_custom_call.1} parent=1 // pred_check_branch
      %24 = sbr.rel (0) target = $region25
    $region24: #{tpu_custom_call.1} parent=1 // pred_region
      _
    $region25: #{tpu_custom_call.1} parent=1 // pred_fallthru
      _
    // Predicated region
    $region26: #{tpu_custom_call.1} parent=1 // pred_check
      _
    $region27: #{tpu_custom_call.1} parent=1 // pred_check_branch
      %26 = sbr.rel (0) target = $region29
    $region28: #{tpu_custom_call.1} parent=1 // pred_region
      _
    $region29: #{tpu_custom_call.1} parent=1 // pred_fallthru
      _
    %vm27 = vcmask 261120
    %28 = vst.msk [vmem:[#allocation2] sm:$0xff] %vm27, 0.0
    %29 = vst.msk [vmem:[#allocation2 + $0x8] sm:$0xff] %vm27, 0.0
    %30 = vst.msk [vmem:[#allocation2 + $0x10] sm:$0xff] %vm27, 0.0
    %31 = vst.msk [vmem:[#allocation2 + $0x18] sm:$0xff] %vm27, 0.0
    %32 = vst.msk [vmem:[#allocation2 + $0x20] sm:$0xff] %vm27, 0.0
    %v33 = vld [vmem:[%s0] sm:$0xf]
    %35 = vrot.lane.b32.xlu0 %v33, 2
    %v36 = vpop.permute.xlu0 %35
    %vm38 = vcmask 125968
    %39 = vst.msk [vmem:[#allocation2] sm:$0xf] %vm38, %v36
    %s40 = scalar_lea.vmem %s0, 4
    %v41 = vld [vmem:[%s40] sm:$0xf]
    %43 = vrot.lane.b32.xlu0 %v41, 18
    %v44 = vpop.permute.xlu0 %43
    %vm46 = vcmask 257168
    %47 = vst.msk [vmem:[#allocation2] sm:$0xf] %vm46, %v44
    %v48 = vld [vmem:[%s0] sm:$0xf]
    %50 = vrot.lane.b32.xlu0 %v48, 1
    %v51 = vpop.permute.xlu0 %50
    %vm53 = vcmask 125960
    %54 = vst.msk [vmem:[#allocation2 + $0x8] sm:$0xf] %vm53, %v51
    %v55 = vld [vmem:[%s40] sm:$0xf]
    %57 = vrot.lane.b32.xlu0 %v55, 17
    %v58 = vpop.permute.xlu0 %57
    %vm60 = vcmask 257160
    %61 = vst.msk [vmem:[#allocation2 + $0x8] sm:$0xf] %vm60, %v58
    %v62 = vld [vmem:[%s0] sm:$0xf]
    %vm63 = vcmask 125952
    %64 = vst.msk [vmem:[#allocation2 + $0x10] sm:$0xf] %vm63, %v62
    %v65 = vld [vmem:[%s40] sm:$0xf]
    %67 = vrot.lane.b32.xlu0 %v65, 16
    %v68 = vpop.permute.xlu0 %67
    %vm70 = vcmask 257152
    %71 = vst.msk [vmem:[#allocation2 + $0x10] sm:$0xf] %vm70, %v68
    %v72 = vld [vmem:[%s0] sm:$0xf]
    %74 = vrot.lane.b32.xlu0 %v72, 127
    %v75 = vpop.permute.xlu0 %74
    %vm77 = vcmask 117760
    %78 = vst.msk [vmem:[#allocation2 + $0x18] sm:$0xf] %vm77, %v75
    %v79 = vld [vmem:[%s40] sm:$0xf]
    %81 = vrot.lane.b32.xlu0 %v79, 15
    %v82 = vpop.permute.xlu0 %81
    %vm84 = vcmask 248960
    %85 = vst.msk [vmem:[#allocation2 + $0x18] sm:$0xf] %vm84, %v82
    %v86 = vld [vmem:[%s0] sm:$0xf]
    %88 = vrot.lane.b32.xlu0 %v86, 126
    %v89 = vpop.permute.xlu0 %88
    %vm91 = vcmask 109568
    %92 = vst.msk [vmem:[#allocation2 + $0x20] sm:$0xf] %vm91, %v89
    %v93 = vld [vmem:[%s40] sm:$0xf]
    %95 = vrot.lane.b32.xlu0 %v93, 14
    %v96 = vpop.permute.xlu0 %95
    %vm98 = vcmask 240768
    %99 = vst.msk [vmem:[#allocation2 + $0x20] sm:$0xf] %vm98, %v96
    %v100 = vld [vmem:[%s1] sm:$0xf]
    %v101 = vld [vmem:[#allocation2] sm:$0xff]
    %v102 = vld [vmem:[#allocation2 + $0x8] sm:$0xff]
    %v103 = vld [vmem:[#allocation2 + $0x10] sm:$0xff]
    %v104 = vld [vmem:[#allocation2 + $0x18] sm:$0xff]
    %v105 = vld [vmem:[#allocation2 + $0x20] sm:$0xff]
    %vm106 = vcmask 326656
    %v108 = vsel %vm106, %v100, 0
    %110 = vmatprep.subr.mxu0 0.0
    %111 = vmatpush1.msra.mxu0 0.0
    %112 = vmatprep.subr.mxu0 0.0
    %113 = vmatpush1.msra.mxu0 0.0
    %114 = vmatprep.subr.mxu0 0.0
    %115 = vmatpush1.msra.mxu0 0.0
    %116 = vmatprep.subr.mxu0 0.0
    %117 = vmatpush1.msra.mxu0 0.0
    %118 = vmatprep.subr.mxu0 0.0
    %119 = vmatpush1.msra.mxu0 0.0
    %120 = vmatprep.subr.mxu0 0.0
    %121 = vmatpush1.msra.mxu0 0.0
    %122 = vmatprep.subr.mxu0 0.0
    %123 = vmatpush1.msra.mxu0 0.0
    %124 = vmatprep.subr.mxu0 0.0
    %125 = vmatpush1.msra.mxu0 0.0
    %126 = vmatprep.subr.mxu0 0.0
    %127 = vmatpush1.msra.mxu0 0.0
    %128 = vmatprep.subr.mxu0 0.0
    %129 = vmatpush1.msra.mxu0 0.0
    %130 = vmatprep.subr.mxu0 0.0
    %131 = vmatpush1.msra.mxu0 0.0
    %132 = vmatprep.subr.mxu0 0.0
    %133 = vmatpush1.msra.mxu0 %v105
    %134 = vmatprep.subr.mxu0 0.0
    %135 = vmatpush1.msra.mxu0 %v104
    %136 = vmatprep.subr.mxu0 0.0
    %137 = vmatpush1.msra.mxu0 %v103
    %138 = vmatprep.subr.mxu0 0.0
    %139 = vmatpush1.msra.mxu0 %v102
    %140 = vmatprep.subr.mxu0 0.0
    %141 = vmatpush1.msra.mxu0 %v101
    %142 = vmatprep.subr.mxu0 0.0
    %143 = vmatpush2.msra.mxu0 0.0
    %144 = vmatprep.subr.mxu0 0.0
    %145 = vmatpush2.msra.mxu0 0.0
    %146 = vmatprep.subr.mxu0 0.0
    %147 = vmatpush2.msra.mxu0 0.0
    %148 = vmatprep.subr.mxu0 0.0
    %149 = vmatpush2.msra.mxu0 0.0
    %150 = vmatprep.subr.mxu0 0.0
    %151 = vmatpush2.msra.mxu0 0.0
    %152 = vmatprep.subr.mxu0 0.0
    %153 = vmatpush2.msra.mxu0 0.0
    %154 = vmatprep.subr.mxu0 0.0
    %155 = vmatpush2.msra.mxu0 0.0
    %156 = vmatprep.subr.mxu0 0.0
    %157 = vmatpush2.msra.mxu0 0.0
    %158 = vmatprep.subr.mxu0 0.0
    %159 = vmatpush2.msra.mxu0 0.0
    %160 = vmatprep.subr.mxu0 0.0
    %161 = vmatpush2.msra.mxu0 0.0
    %162 = vmatprep.subr.mxu0 0.0
    %163 = vmatpush2.msra.mxu0 0.0
    %164 = vmatprep.subr.mxu0 0.0
    %165 = vmatpush2.msra.mxu0 0.0
    %166 = vmatprep.subr.mxu0 0.0
    %167 = vmatpush2.msra.mxu0 0.0
    %168 = vmatprep.subr.mxu0 0.0
    %169 = vmatpush2.msra.mxu0 0.0
    %170 = vmatprep.subr.mxu0 0.0
    %171 = vmatpush2.msra.mxu0 0.0
    %172 = vmatprep.subr.mxu0 0.0
    %173 = vmatpush2.msra.mxu0 0.0
    %174 = vmatprep.mubr.f32.mxu0 0.0
    %175 = vmatmul.mubr.f32.gmra.mxu0 %v108
    %v176 = vpop.f32.mrf.mxu0
    %v177 = vadd.f32 0.0, %v176
    %v178 = vpop.f32.mrf.mxu0
    %179 = vdwg.mxu0
    %v180 = vld [vmem:[%s2] sm:$0xf]
    %v181 = vld [vmem:[%s3] sm:$0xf]
    %vm182 = vcmask 257024
    %v183 = vsel %vm182, %v177, 0.0
    %184 = vadd.xlane.f32.xlu0 %v183
    %v185 = vpop.xlane.xlu0 %184
    %v186 = vmul.f32 %v185, 0.03125
    %v187 = vsub.f32 %v177, %v186
    %v188 = vmul.f32 %v187, %v187
    %v189 = vsel %vm182, %v188, 0.0
    %190 = vadd.xlane.f32.xlu0 %v189
    %v191 = vpop.xlane.xlu0 %190
    %v192 = vmul.f32 %v191, 0.03125
    %v193 = vadd.f32 %v192, 1e-05
    %v194 = vrsqrt.pop %v193
    %v195 = vmul.f32 %v180, %v194
    %v196 = vmul.f32 %v186, %v195
    %v197 = vsub.f32 %v181, %v196
    %199 = vset.pattern.permute.xlu0 0
    %200 = vperm.xlu0 %199, %v195
    %v201 = vpop.permute.xlu0 %200
    %v203 = vmul.f32 %v177, %v201
    %205 = vset.pattern.permute.xlu0 0
    %206 = vperm.xlu0 %205, %v197
    %v207 = vpop.permute.xlu0 %206
    %v209 = vadd.f32 %v203, %v207
    %v210 = vmax.f32 %v209, 0.0
    %212 = vrot.lane.b32.xlu0 %v210, 2
    %v213 = vpop.permute.xlu0 %212
    %215 = vst.msk [vmem:[#allocation2] sm:$0xf] %vm38, %v213
    %216 = vst.msk [vmem:[#allocation2] sm:$0xf] %vm46, %v213
    %217 = vrot.lane.b32.xlu0 %v210, 1
    %v218 = vpop.permute.xlu0 %217
    %220 = vst.msk [vmem:[#allocation2 + $0x8] sm:$0xf] %vm53, %v218
    %221 = vst.msk [vmem:[#allocation2 + $0x8] sm:$0xf] %vm60, %v218
    %222 = vst.msk [vmem:[#allocation2 + $0x10] sm:$0xf] %vm63, %v210
    %223 = vst.msk [vmem:[#allocation2 + $0x10] sm:$0xf] %vm70, %v210
    %224 = vrot.lane.b32.xlu0 %v210, 127
    %v225 = vpop.permute.xlu0 %224
    %227 = vst.msk [vmem:[#allocation2 + $0x18] sm:$0xf] %vm77, %v225
    %228 = vst.msk [vmem:[#allocation2 + $0x18] sm:$0xf] %vm84, %v225
    %229 = vrot.lane.b32.xlu0 %v210, 126
    %v230 = vpop.permute.xlu0 %229
    %232 = vst.msk [vmem:[#allocation2 + $0x20] sm:$0xf] %vm91, %v230
    %233 = vst.msk [vmem:[#allocation2 + $0x20] sm:$0xf] %vm98, %v230
    %v234 = vld [vmem:[%s4] sm:$0xf]
    %v235 = vld [vmem:[#allocation2] sm:$0xff]
    %v236 = vld [vmem:[#allocation2 + $0x8] sm:$0xff]
    %v237 = vld [vmem:[#allocation2 + $0x10] sm:$0xff]
    %v238 = vld [vmem:[#allocation2 + $0x18] sm:$0xff]
    %v239 = vld [vmem:[#allocation2 + $0x20] sm:$0xff]
    %v241 = vsel %vm106, %v234, 0
    %243 = vmatprep.subr.mxu0 0.0
    %244 = vmatpush1.msra.mxu0 0.0
    %245 = vmatprep.subr.mxu0 0.0
    %246 = vmatpush1.msra.mxu0 0.0
    %247 = vmatprep.subr.mxu0 0.0
    %248 = vmatpush1.msra.mxu0 0.0
    %249 = vmatprep.subr.mxu0 0.0
    %250 = vmatpush1.msra.mxu0 0.0
    %251 = vmatprep.subr.mxu0 0.0
    %252 = vmatpush1.msra.mxu0 0.0
    %253 = vmatprep.subr.mxu0 0.0
    %254 = vmatpush1.msra.mxu0 0.0
    %255 = vmatprep.subr.mxu0 0.0
    %256 = vmatpush1.msra.mxu0 0.0
    %257 = vmatprep.subr.mxu0 0.0
    %258 = vmatpush1.msra.mxu0 0.0
    %259 = vmatprep.subr.mxu0 0.0
    %260 = vmatpush1.msra.mxu0 0.0
    %261 = vmatprep.subr.mxu0 0.0
    %262 = vmatpush1.msra.mxu0 0.0
    %263 = vmatprep.subr.mxu0 0.0
    %264 = vmatpush1.msra.mxu0 0.0
    %265 = vmatprep.subr.mxu0 0.0
    %266 = vmatpush1.msra.mxu0 %v239
    %267 = vmatprep.subr.mxu0 0.0
    %268 = vmatpush1.msra.mxu0 %v238
    %269 = vmatprep.subr.mxu0 0.0
    %270 = vmatpush1.msra.mxu0 %v237
    %271 = vmatprep.subr.mxu0 0.0
    %272 = vmatpush1.msra.mxu0 %v236
    %273 = vmatprep.subr.mxu0 0.0
    %274 = vmatpush1.msra.mxu0 %v235
    %275 = vmatprep.subr.mxu0 0.0
    %276 = vmatpush2.msra.mxu0 0.0
    %277 = vmatprep.subr.mxu0 0.0
    %278 = vmatpush2.msra.mxu0 0.0
    %279 = vmatprep.subr.mxu0 0.0
    %280 = vmatpush2.msra.mxu0 0.0
    %281 = vmatprep.subr.mxu0 0.0
    %282 = vmatpush2.msra.mxu0 0.0
    %283 = vmatprep.subr.mxu0 0.0
    %284 = vmatpush2.msra.mxu0 0.0
    %285 = vmatprep.subr.mxu0 0.0
    %286 = vmatpush2.msra.mxu0 0.0
    %287 = vmatprep.subr.mxu0 0.0
    %288 = vmatpush2.msra.mxu0 0.0
    %289 = vmatprep.subr.mxu0 0.0
    %290 = vmatpush2.msra.mxu0 0.0
    %291 = vmatprep.subr.mxu0 0.0
    %292 = vmatpush2.msra.mxu0 0.0
    %293 = vmatprep.subr.mxu0 0.0
    %294 = vmatpush2.msra.mxu0 0.0
    %295 = vmatprep.subr.mxu0 0.0
    %296 = vmatpush2.msra.mxu0 0.0
    %297 = vmatprep.subr.mxu0 0.0
    %298 = vmatpush2.msra.mxu0 0.0
    %299 = vmatprep.subr.mxu0 0.0
    %300 = vmatpush2.msra.mxu0 0.0
    %301 = vmatprep.subr.mxu0 0.0
    %302 = vmatpush2.msra.mxu0 0.0
    %303 = vmatprep.subr.mxu0 0.0
    %304 = vmatpush2.msra.mxu0 0.0
    %305 = vmatprep.subr.mxu0 0.0
    %306 = vmatpush2.msra.mxu0 0.0
    %307 = vmatprep.mubr.f32.mxu0 0.0
    %308 = vmatmul.mubr.f32.gmra.mxu0 %v241
    %v309 = vpop.f32.mrf.mxu0
    %v310 = vadd.f32 0.0, %v309
    %v311 = vpop.f32.mrf.mxu0
    %312 = vdwg.mxu0
    %v313 = vld [vmem:[%s5] sm:$0xf]
    %v314 = vld [vmem:[%s6] sm:$0xf]
    %v315 = vsel %vm182, %v310, 0.0
    %316 = vadd.xlane.f32.xlu0 %v315
    %v317 = vpop.xlane.xlu0 %316
    %v318 = vmul.f32 %v317, 0.03125
    %v319 = vsub.f32 %v310, %v318
    %v320 = vmul.f32 %v319, %v319
    %v321 = vsel %vm182, %v320, 0.0
    %322 = vadd.xlane.f32.xlu0 %v321
    %v323 = vpop.xlane.xlu0 %322
    %v324 = vmul.f32 %v323, 0.03125
    %v325 = vadd.f32 %v324, 1e-05
    %v326 = vrsqrt.pop %v325
    %v327 = vmul.f32 %v313, %v326
    %v328 = vmul.f32 %v318, %v327
    %v329 = vsub.f32 %v314, %v328
    %331 = vset.pattern.permute.xlu0 0
    %332 = vperm.xlu0 %331, %v327
    %v333 = vpop.permute.xlu0 %332
    %v335 = vmul.f32 %v310, %v333
    %337 = vset.pattern.permute.xlu0 0
    %338 = vperm.xlu0 %337, %v329
    %v339 = vpop.permute.xlu0 %338
    %v341 = vadd.f32 %v335, %v339
    %v342 = vld [vmem:[%s0] sm:$0xf]
    %v343 = vadd.f32 %v341, %v342
    %v344 = vmax.f32 %v343, 0.0
    %345 = vst.msk [vmem:[#allocation3] sm:$0xf] %vm63, %v344
    %v346 = vld [vmem:[%s40] sm:$0xf]
    %348 = vrot.lane.b32.xlu0 %v346, 16
    %v349 = vpop.permute.xlu0 %348
    %v351 = vadd.f32 %v341, %v349
    %v352 = vmax.f32 %v351, 0.0
    %354 = vrot.lane.b32.xlu0 %v352, 112
    %v355 = vpop.permute.xlu0 %354
    %s357 = scalar_lea.vmem [#allocation3], 4
    %358 = vst.msk [vmem:[%s357] sm:$0xf] %vm63, %v355
    // Predicated region
    $region30: #{tpu_custom_call.1} parent=1 // pred_check
      _
    $region31: #{tpu_custom_call.1} parent=1 // pred_check_branch
      %360 = sbr.rel (0) target = $region33
    $region32: #{tpu_custom_call.1} parent=1 // pred_region
      %s362 = ssub.s32 128, 128
      %363 = vsyncadd [#allocation4], %s362
      %s364 = sshll.u32 [#allocation3], 4
      %s365 = int_to_ptr.vmem [resolvable:$true] %s364
      %370 = dma.vmem_to_hbm [thread:$0]  %s365, 128, %s7, [#allocation4], 64, 64, 4
    $region33: #{tpu_custom_call.1} parent=1 // pred_fallthru
      _
    // Predicated region
    $region34: #{tpu_custom_call.1} parent=1 // pred_check
      _
    $region35: #{tpu_custom_call.1} parent=1 // pred_check_branch
      %372 = sbr.rel (0) target = $region37
    $region36: #{tpu_custom_call.1} parent=1 // pred_region
      %373 = dma.done [#allocation4], 128
    $region37: #{tpu_custom_call.1} parent=1 // pred_fallthru
      _
    %374 = vsyncpa [#allocation4], 1

</llo_original>
